<compile_context>
chip_gen: v6e
topology: v6e:2x2x1
jax: 0.10.0
libtpu: 0.0.40
codegen_flags: <defaults>
</compile_context>

<pallas_src>
import functools

import jax
import jax.numpy as jnp
from jax.experimental import pallas as pl
from jax.experimental.pallas import tpu as pltpu

_LANE = 128  # TPU lane width.


def _round_up(x, m):
    return ((x + m - 1) // m) * m


def _modnet_kernel(z_ref, w1_ref, b1_ref, wgb_ref, out_ref):
    # z_ref  : (TM, noise_dim)      f32 activation tile (streamed per grid step)
    # w1_ref : (noise_dim, H_pad)   weight dtype (bf16/f32), VMEM-resident
    # b1_ref : (1, H_pad)           f32, VMEM-resident
    # wgb_ref: (H_pad, n_pad)       weight dtype, fused [Wg | Wb | zeros], resident
    # out_ref: (TM, n_pad)          lane-dense output slab
    w1 = w1_ref[...]
    # L1: MXU matmul with f32 accumulation (inputs cast to weight dtype).
    x = jnp.dot(z_ref[...].astype(w1.dtype), w1,
                preferred_element_type=jnp.float32)
    # Bias + ReLU epilogue kept in f32 (exact; v5e VPU has no bf16 path).
    x = jnp.maximum(x + b1_ref[...], 0.0)
    # Fused gamma/beta head matmul, single unmasked full-lane store.
    wgb = wgb_ref[...]
    out = jnp.dot(x.astype(wgb.dtype), wgb,
                  preferred_element_type=jnp.float32)
    out_ref[...] = out.astype(out_ref.dtype)


def prepare_modnet_params(w1, b1, wg, wb, *, weight_dtype=jnp.bfloat16):
    """One-time parameter prep (NOT part of the per-call hot path).

    w1: (hidden, noise_dim)   PyTorch nn.Linear layout
    b1: (hidden,)
    wg, wb: (out_features, hidden) PyTorch layout (bias-free heads)

    Returns (w1_t_pad, b1_pad, wgb_pad, out_features).
      w1_t_pad : (noise_dim, H_pad)  weight_dtype
      b1_pad   : (1, H_pad)          f32
      wgb_pad  : (H_pad, n_pad)      weight_dtype, [Wg | Wb | zeros]
    """
    hidden, noise_dim = w1.shape
    out_features = int(wg.shape[0])

    h_pad = _round_up(max(hidden, _LANE), _LANE)          # lane-dense hidden
    n_fused = 2 * out_features
    n_pad = _round_up(max(n_fused, _LANE), _LANE)         # lane-dense output

    w1_t = jnp.pad(jnp.transpose(w1), ((0, 0), (0, h_pad - hidden)))
    b1_2d = jnp.pad(b1.reshape(1, hidden), ((0, 0), (0, h_pad - hidden)))
    wgb = jnp.transpose(jnp.concatenate([wg, wb], axis=0))  # (hidden, 2*out)
    wgb = jnp.pad(wgb, ((0, h_pad - hidden), (0, n_pad - n_fused)))

    return (w1_t.astype(weight_dtype),
            b1_2d.astype(jnp.float32),
            wgb.astype(weight_dtype),
            out_features)


def modulating_net_forward(z, w1_t, b1, wgb, *, out_features, block_rows=256):
    """z: (B, noise_dim). Other args come from prepare_modnet_params().
    Returns (gamma, beta), each (B, out_features, 1, 1)."""
    B, noise_dim = z.shape
    h_pad = w1_t.shape[1]
    n_pad = wgb.shape[1]

    # Row tile: up to `block_rows` (fills 256-row MXU on v6e/v7x when batch is
    # large), but never more than the (8-aligned) batch itself.
    tm = min(block_rows, _round_up(B, 8))
    b_pad = _round_up(B, tm)
    if b_pad != B:
        z = jnp.pad(z, ((0, b_pad - B), (0, 0)))
    grid = (b_pad // tm,)

    flops = 2 * b_pad * noise_dim * h_pad + 2 * b_pad * h_pad * n_pad
    bytes_accessed = (z.size * z.dtype.itemsize
                      + w1_t.size * w1_t.dtype.itemsize
                      + b1.size * b1.dtype.itemsize
                      + wgb.size * wgb.dtype.itemsize
                      + b_pad * n_pad * z.dtype.itemsize)

    out2d = pl.pallas_call(
        _modnet_kernel,
        out_shape=jax.ShapeDtypeStruct((b_pad, n_pad), z.dtype),
        grid=grid,
        in_specs=[
            # streamed per batch-row tile
            pl.BlockSpec((tm, noise_dim), lambda i: (i, 0)),
            # weights: constant index_map -> DMA once, VMEM-resident
            pl.BlockSpec((noise_dim, h_pad), lambda i: (0, 0)),
            pl.BlockSpec((1, h_pad), lambda i: (0, 0)),
            pl.BlockSpec((h_pad, n_pad), lambda i: (0, 0)),
        ],
        out_specs=pl.BlockSpec((tm, n_pad), lambda i: (i, 0)),
        compiler_params=pltpu.CompilerParams(
            dimension_semantics=("parallel",)),
        cost_estimate=pl.CostEstimate(
            flops=flops, transcendentals=0, bytes_accessed=bytes_accessed),
    )(z, w1_t, b1, wgb)

    # Single slice + reshape: [gamma | beta] -> (B, 2, out, 1, 1), then unbind.
    gb = out2d[:B, :2 * out_features].reshape(B, 2, out_features, 1, 1)
    return gb[:, 0], gb[:, 1]


if __name__ == "__main__":
    # Module hyperparameters (consistent with __init__ defaults, small shapes).
    noise_dim = 128
    hidden_features = 32
    out_features = 16
    batch = 8

    key = jax.random.PRNGKey(0)
    kz, k1, kb, kg, kbt = jax.random.split(key, 5)

    # Deterministic synthetic parameters (PyTorch Linear weight layouts).
    z = jax.random.normal(kz, (batch, noise_dim), dtype=jnp.float32)
    w1 = jax.random.normal(k1, (hidden_features, noise_dim), dtype=jnp.float32) * 0.05
    b1 = jax.random.normal(kb, (hidden_features,), dtype=jnp.float32) * 0.05
    wg = jax.random.normal(kg, (out_features, hidden_features), dtype=jnp.float32) * 0.05
    wb = jax.random.normal(kbt, (out_features, hidden_features), dtype=jnp.float32) * 0.05

    # Plain-JAX reference (same math as the PyTorch forward).
    x_ref = jnp.maximum(z @ w1.T + b1, 0.0)
    g_ref = (x_ref @ wg.T).reshape(batch, out_features, 1, 1)
    b_ref = (x_ref @ wb.T).reshape(batch, out_features, 1, 1)

    # ---- Path 1: exact f32 weights (tight tolerance) -----------------------
    p32 = prepare_modnet_params(w1, b1, wg, wb, weight_dtype=jnp.float32)
    w1_t32, b1_32, wgb_32, out_f = p32
    fwd32 = jax.jit(functools.partial(
        modulating_net_forward, out_features=out_f, block_rows=256))
    gamma32, beta32 = fwd32(z, w1_t32, b1_32, wgb_32)
    jax.block_until_ready((gamma32, beta32))
    assert gamma32.shape == (batch, out_features, 1, 1)
    assert beta32.shape == (batch, out_features, 1, 1)
    assert jnp.allclose(gamma32, g_ref, atol=1e-5, rtol=1e-5)
    assert jnp.allclose(beta32, b_ref, atol=1e-5, rtol=1e-5)

    # ---- Path 2: bf16 weights (default; half weight DMA, MXU-native) -------
    p16 = prepare_modnet_params(w1, b1, wg, wb, weight_dtype=jnp.bfloat16)
    w1_t16, b1_16, wgb_16, _ = p16
    fwd16 = jax.jit(functools.partial(
        modulating_net_forward, out_features=out_f, block_rows=256))
    gamma16, beta16 = fwd16(z, w1_t16, b1_16, wgb_16)
    jax.block_until_ready((gamma16, beta16))
    assert jnp.allclose(gamma16, g_ref, atol=2e-2, rtol=5e-2)
    assert jnp.allclose(beta16, b_ref, atol=2e-2, rtol=5e-2)

    # ---- Path 3: exercise the grid (>1 batch tiles) + row-pad path ---------
    batch_big = 40
    z_big = jax.random.normal(jax.random.PRNGKey(1), (batch_big, noise_dim),
                              dtype=jnp.float32)
    fwd_grid = jax.jit(functools.partial(
        modulating_net_forward, out_features=out_f, block_rows=16))
    gamma_g, beta_g = fwd_grid(z_big, w1_t32, b1_32, wgb_32)
    jax.block_until_ready((gamma_g, beta_g))
    xg = jnp.maximum(z_big @ w1.T + b1, 0.0)
    assert gamma_g.shape == (batch_big, out_features, 1, 1)
    assert jnp.allclose(gamma_g,
                        (xg @ wg.T).reshape(batch_big, out_features, 1, 1),
                        atol=1e-5, rtol=1e-5)
    assert jnp.allclose(beta_g,
                        (xg @ wb.T).reshape(batch_big, out_features, 1, 1),
                        atol=1e-5, rtol=1e-5)

    print("KERNEL_OK")
</pallas_src>

<mosaic_0001>
module attributes {stable_mosaic.version = 11 : i64} {
  func.func @_modnet_kernel(%arg0: i32, %arg1: memref<8x128xf32, #tpu.memory_space<vmem>>, %arg2: memref<128x128xf32, #tpu.memory_space<vmem>>, %arg3: memref<1x128xf32, #tpu.memory_space<vmem>>, %arg4: memref<128x128xf32, #tpu.memory_space<vmem>>, %arg5: memref<8x128xf32, #tpu.memory_space<vmem>>) attributes {dimension_semantics = [#tpu.dimension_semantics<parallel>], iteration_bounds = array<i64: 1>, scalar_prefetch = 0 : i64, scratch_operands = 0 : i64, tpu.core_type = #tpu.core_type<tc>, window_params = [{transform_indices = @transform_0, window_bounds = array<i64: 8, 128>}, {pipeline_mode = #tpu.pipeline_mode<synchronous>, transform_indices = @transform_1, window_bounds = array<i64: 128, 128>}, {pipeline_mode = #tpu.pipeline_mode<synchronous>, transform_indices = @transform_2, window_bounds = array<i64: 1, 128>}, {pipeline_mode = #tpu.pipeline_mode<synchronous>, transform_indices = @transform_3, window_bounds = array<i64: 128, 128>}, {transform_indices = @transform_4, window_bounds = array<i64: 8, 128>}]} {
    %c0 = arith.constant 0 : index
    %c0_0 = arith.constant 0 : index
    %0 = vector.load %arg2[%c0, %c0_0] : memref<128x128xf32, #tpu.memory_space<vmem>>, vector<128x128xf32>
    %c0_1 = arith.constant 0 : index
    %c0_2 = arith.constant 0 : index
    %1 = vector.load %arg1[%c0_1, %c0_2] : memref<8x128xf32, #tpu.memory_space<vmem>>, vector<8x128xf32>
    %cst = arith.constant dense<0.000000e+00> : vector<8x128xf32>
    %2 = tpu.matmul %1, %0, %cst {dimension_numbers = #tpu.dot_dimension_numbers<[1], [0], [0], [1], [0, 0, 1, 1], [], []>} : vector<8x128xf32>, vector<128x128xf32>, vector<8x128xf32> -> vector<8x128xf32>
    %c0_3 = arith.constant 0 : index
    %c0_4 = arith.constant 0 : index
    %3 = vector.load %arg3[%c0_3, %c0_4] : memref<1x128xf32, #tpu.memory_space<vmem>>, vector<1x128xf32>
    %4 = vector.broadcast %3 : vector<1x128xf32> to vector<8x128xf32>
    %5 = arith.addf %2, %4 : vector<8x128xf32>
    %cst_5 = arith.constant 0.000000e+00 : f32
    %6 = vector.broadcast %cst_5 : f32 to vector<8x128xf32>
    %7 = arith.maximumf %5, %6 : vector<8x128xf32>
    %c0_6 = arith.constant 0 : index
    %c0_7 = arith.constant 0 : index
    %8 = vector.load %arg4[%c0_6, %c0_7] : memref<128x128xf32, #tpu.memory_space<vmem>>, vector<128x128xf32>
    %cst_8 = arith.constant dense<0.000000e+00> : vector<8x128xf32>
    %9 = tpu.matmul %7, %8, %cst_8 {dimension_numbers = #tpu.dot_dimension_numbers<[1], [0], [0], [1], [0, 0, 1, 1], [], []>} : vector<8x128xf32>, vector<128x128xf32>, vector<8x128xf32> -> vector<8x128xf32>
    %c0_9 = arith.constant 0 : index
    %c0_10 = arith.constant 0 : index
    %10 = vector.load %arg5[%c0_9, %c0_10] : memref<8x128xf32, #tpu.memory_space<vmem>>, vector<8x128xf32>
    tpu.vector_store %arg5[%c0_9, %c0_10], %9 {strides = array<i32>} : memref<8x128xf32, #tpu.memory_space<vmem>>, vector<8x128xf32>,
    return
  }
  func.func @transform_0(%arg0: i32) -> (i32, i32) {
    %c0_i32 = arith.constant 0 : i32
    %c0_i32_0 = arith.constant 0 : i32
    return %arg0, %c0_i32 : i32, i32
  }
  func.func @transform_1(%arg0: i32) -> (i32, i32) {
    %c0_i32 = arith.constant 0 : i32
    %c0_i32_0 = arith.constant 0 : i32
    %c0_i32_1 = arith.constant 0 : i32
    return %c0_i32, %c0_i32_0 : i32, i32
  }
  func.func @transform_2(%arg0: i32) -> (i32, i32) {
    %c0_i32 = arith.constant 0 : i32
    %c0_i32_0 = arith.constant 0 : i32
    %c0_i32_1 = arith.constant 0 : i32
    return %c0_i32, %c0_i32_0 : i32, i32
  }
  func.func @transform_3(%arg0: i32) -> (i32, i32) {
    %c0_i32 = arith.constant 0 : i32
    %c0_i32_0 = arith.constant 0 : i32
    %c0_i32_1 = arith.constant 0 : i32
    return %c0_i32, %c0_i32_0 : i32, i32
  }
  func.func @transform_4(%arg0: i32) -> (i32, i32) {
    %c0_i32 = arith.constant 0 : i32
    %c0_i32_0 = arith.constant 0 : i32
    return %arg0, %c0_i32 : i32, i32
  }
}

</mosaic_0001>

<llo_original>
// kernel: modulating_net_forward.1
$region0: #{modulating_net_forward.1}
  #allocation0 [shape = 'u32[]', space=smem, size = 0x4, offset = 0x4, fixed_abs, tag = 'smem constant byte address 0x4 - core index']
  #allocation1 [shape = 'u32[144,128]{1,0:T(1,128)}', space=vmem, size = 0x12000, scoped, tag = 'internal scratch']
  %s0 = inlined_call_operand.hbm [shape: f32[8,128], index: 0, kind: input, shape index: {}]
  %s1 = inlined_call_operand.hbm [shape: f32[128,128], index: 1, kind: input, shape index: {}]
  %s2 = inlined_call_operand.vmem [shape: f32[1,128], index: 2, kind: input, shape index: {}]
  %s3 = inlined_call_operand.hbm [shape: f32[128,128], index: 3, kind: input, shape index: {}]
  %s4 = inlined_call_operand.vmem [shape: f32[8,128], index: 4, kind: output, shape index: {}]
  %s5 = sld [smem:[#allocation0]]
  $region38: #{modulating_net_forward.1} parent=0
    _
  %s7 = ssub.s32 1, %s5
  %s8 = scalar_select 0, %s7, %s5
  $region1: #{modulating_net_forward.1} parent=0
    #allocation2 [shape = 'u8[4096]{0}', space=vmem, size = 0x1000, scoped, tag = 'input window, operand 0, single buffered']
    #allocation3 [shape = 's32[1]{0}', space=sflag, size = 0x4, scoped, tag = 'scoped memory for modulating_net_forward.1']
    #allocation4 [shape = 'u8[65536]{0}', space=vmem, size = 0x10000, scoped, tag = 'input window, operand 1, single buffered']
    #allocation5 [shape = 's32[1]{0}', space=sflag, size = 0x4, scoped, tag = 'scoped memory for modulating_net_forward.1']
    #allocation6 [shape = 'u8[65536]{0}', space=vmem, size = 0x10000, scoped, tag = 'input window, operand 3, single buffered']
    %9 = vsyncpa [#allocation3], 0
    %10 = vsyncpa [#allocation5], 0
    // Predicated region
    $region2: #{modulating_net_forward.1} parent=1 // pred_check
      _
    $region3: #{modulating_net_forward.1} parent=1 // pred_check_branch
      %12 = sbr.rel (0) target = $region5
    $region4: #{modulating_net_forward.1} parent=1 // pred_region
      %s14 = ssub.s32 128, 128
      %15 = vsyncadd [#allocation3], %s14
      %s17 = sshll.u32 [#allocation2], 4
      %s18 = int_to_ptr.vmem [resolvable:$true] %s17
      %20 = dma.hbm_to_vmem [thread:$0]  %s0, 128, %s18, [#allocation3]
    $region5: #{modulating_net_forward.1} parent=1 // pred_fallthru
      _
    // Predicated region
    $region6: #{modulating_net_forward.1} parent=1 // pred_check
      _
    $region7: #{modulating_net_forward.1} parent=1 // pred_check_branch
      %22 = sbr.rel (0) target = $region9
    $region8: #{modulating_net_forward.1} parent=1 // pred_region
      %s24 = ssub.s32 2048, 2048
      %25 = vsyncadd [#allocation5], %s24
      %s26 = sshll.u32 [#allocation4], 4
      %s27 = int_to_ptr.vmem [resolvable:$true] %s26
      %32 = dma.hbm_to_vmem [thread:$0]  %s1, 2048, %s27, [#allocation5], 128, 128, 8
    $region9: #{modulating_net_forward.1} parent=1 // pred_fallthru
      _
    // Predicated region
    $region10: #{modulating_net_forward.1} parent=1 // pred_check
      _
    $region11: #{modulating_net_forward.1} parent=1 // pred_check_branch
      %34 = sbr.rel (0) target = $region13
    $region12: #{modulating_net_forward.1} parent=1 // pred_region
      _
    $region13: #{modulating_net_forward.1} parent=1 // pred_fallthru
      _
    // Predicated region
    $region14: #{modulating_net_forward.1} parent=1 // pred_check
      _
    $region15: #{modulating_net_forward.1} parent=1 // pred_check_branch
      %36 = sbr.rel (0) target = $region17
    $region16: #{modulating_net_forward.1} parent=1 // pred_region
      %s38 = ssub.s32 2048, 2048
      %39 = vsyncadd [#allocation5], %s38
      %s40 = sshll.u32 [#allocation6], 4
      %s41 = int_to_ptr.vmem [resolvable:$true] %s40
      %46 = dma.hbm_to_vmem [thread:$0]  %s3, 2048, %s41, [#allocation5], 128, 128, 8
    $region17: #{modulating_net_forward.1} parent=1 // pred_fallthru
      _
    // Predicated region
    $region18: #{modulating_net_forward.1} parent=1 // pred_check
      _
    $region19: #{modulating_net_forward.1} parent=1 // pred_check_branch
      %48 = sbr.rel (0) target = $region21
    $region20: #{modulating_net_forward.1} parent=1 // pred_region
      %49 = dma.done [#allocation3], 128
    $region21: #{modulating_net_forward.1} parent=1 // pred_fallthru
      _
    // Predicated region
    $region22: #{modulating_net_forward.1} parent=1 // pred_check
      _
    $region23: #{modulating_net_forward.1} parent=1 // pred_check_branch
      %51 = sbr.rel (0) target = $region25
    $region24: #{modulating_net_forward.1} parent=1 // pred_region
      %52 = dma.done [#allocation5], 2048
    $region25: #{modulating_net_forward.1} parent=1 // pred_fallthru
      _
    // Predicated region
    $region26: #{modulating_net_forward.1} parent=1 // pred_check
      _
    $region27: #{modulating_net_forward.1} parent=1 // pred_check_branch
      %54 = sbr.rel (0) target = $region29
    $region28: #{modulating_net_forward.1} parent=1 // pred_region
      %55 = dma.done [#allocation5], 2048
    $region29: #{modulating_net_forward.1} parent=1 // pred_fallthru
      _
    %v56 = vld [vmem:[#allocation4] sm:$0xff]
    %v57 = vld [vmem:[#allocation4 + $0x8] sm:$0xff]
    %v58 = vld [vmem:[#allocation4 + $0x10] sm:$0xff]
    %v59 = vld [vmem:[#allocation4 + $0x18] sm:$0xff]
    %v60 = vld [vmem:[#allocation4 + $0x20] sm:$0xff]
    %v61 = vld [vmem:[#allocation4 + $0x28] sm:$0xff]
    %v62 = vld [vmem:[#allocation4 + $0x30] sm:$0xff]
    %v63 = vld [vmem:[#allocation4 + $0x38] sm:$0xff]
    %v64 = vld [vmem:[#allocation4 + $0x40] sm:$0xff]
    %v65 = vld [vmem:[#allocation4 + $0x48] sm:$0xff]
    %v66 = vld [vmem:[#allocation4 + $0x50] sm:$0xff]
    %v67 = vld [vmem:[#allocation4 + $0x58] sm:$0xff]
    %v68 = vld [vmem:[#allocation4 + $0x60] sm:$0xff]
    %v69 = vld [vmem:[#allocation4 + $0x68] sm:$0xff]
    %v70 = vld [vmem:[#allocation4 + $0x70] sm:$0xff]
    %v71 = vld [vmem:[#allocation4 + $0x78] sm:$0xff]
    %v72 = vld [vmem:[#allocation2] sm:$0xff]
    %v73 = vld [vmem:[%s2] sm:$0x1]
    %v75 = vlaneseq
    %v76 = vshrl.u32 %v75, 7
    %v77 = vsub.s32 0, %v76
    %v78 = vrot.slane %v73, %v77
    %80 = vmatprep.subr.mxu0 0.0
    %81 = vmatpush1.msra.mxu0 %v71
    %82 = vmatprep.subr.mxu0 0.0
    %83 = vmatpush1.msra.mxu0 %v70
    %84 = vmatprep.subr.mxu0 0.0
    %85 = vmatpush1.msra.mxu0 %v69
    %86 = vmatprep.subr.mxu0 0.0
    %87 = vmatpush1.msra.mxu0 %v68
    %88 = vmatprep.subr.mxu0 0.0
    %89 = vmatpush1.msra.mxu0 %v67
    %90 = vmatprep.subr.mxu0 0.0
    %91 = vmatpush1.msra.mxu0 %v66
    %92 = vmatprep.subr.mxu0 0.0
    %93 = vmatpush1.msra.mxu0 %v65
    %94 = vmatprep.subr.mxu0 0.0
    %95 = vmatpush1.msra.mxu0 %v64
    %96 = vmatprep.subr.mxu0 0.0
    %97 = vmatpush1.msra.mxu0 %v63
    %98 = vmatprep.subr.mxu0 0.0
    %99 = vmatpush1.msra.mxu0 %v62
    %100 = vmatprep.subr.mxu0 0.0
    %101 = vmatpush1.msra.mxu0 %v61
    %102 = vmatprep.subr.mxu0 0.0
    %103 = vmatpush1.msra.mxu0 %v60
    %104 = vmatprep.subr.mxu0 0.0
    %105 = vmatpush1.msra.mxu0 %v59
    %106 = vmatprep.subr.mxu0 0.0
    %107 = vmatpush1.msra.mxu0 %v58
    %108 = vmatprep.subr.mxu0 0.0
    %109 = vmatpush1.msra.mxu0 %v57
    %110 = vmatprep.subr.mxu0 0.0
    %111 = vmatpush1.msra.mxu0 %v56
    %112 = vmatprep.subr.mxu0 0.0
    %113 = vmatpush2.msra.mxu0 0.0
    %114 = vmatprep.subr.mxu0 0.0
    %115 = vmatpush2.msra.mxu0 0.0
    %116 = vmatprep.subr.mxu0 0.0
    %117 = vmatpush2.msra.mxu0 0.0
    %118 = vmatprep.subr.mxu0 0.0
    %119 = vmatpush2.msra.mxu0 0.0
    %120 = vmatprep.subr.mxu0 0.0
    %121 = vmatpush2.msra.mxu0 0.0
    %122 = vmatprep.subr.mxu0 0.0
    %123 = vmatpush2.msra.mxu0 0.0
    %124 = vmatprep.subr.mxu0 0.0
    %125 = vmatpush2.msra.mxu0 0.0
    %126 = vmatprep.subr.mxu0 0.0
    %127 = vmatpush2.msra.mxu0 0.0
    %128 = vmatprep.subr.mxu0 0.0
    %129 = vmatpush2.msra.mxu0 0.0
    %130 = vmatprep.subr.mxu0 0.0
    %131 = vmatpush2.msra.mxu0 0.0
    %132 = vmatprep.subr.mxu0 0.0
    %133 = vmatpush2.msra.mxu0 0.0
    %134 = vmatprep.subr.mxu0 0.0
    %135 = vmatpush2.msra.mxu0 0.0
    %136 = vmatprep.subr.mxu0 0.0
    %137 = vmatpush2.msra.mxu0 0.0
    %138 = vmatprep.subr.mxu0 0.0
    %139 = vmatpush2.msra.mxu0 0.0
    %140 = vmatprep.subr.mxu0 0.0
    %141 = vmatpush2.msra.mxu0 0.0
    %142 = vmatprep.subr.mxu0 0.0
    %143 = vmatpush2.msra.mxu0 0.0
    %144 = vmatprep.mubr.f32.mxu0 0.0
    %145 = vmatmul.mubr.f32.gmra.mxu0 %v72
    %v146 = vpop.f32.mrf.mxu0
    %v147 = vadd.f32 %v78, %v146
    %v148 = vpop.f32.mrf.mxu0
    %149 = vdwg.mxu0
    %v150 = vmax.f32 %v147, 0.0
    %v151 = vld [vmem:[#allocation6] sm:$0xff]
    %v152 = vld [vmem:[#allocation6 + $0x8] sm:$0xff]
    %v153 = vld [vmem:[#allocation6 + $0x10] sm:$0xff]
    %v154 = vld [vmem:[#allocation6 + $0x18] sm:$0xff]
    %v155 = vld [vmem:[#allocation6 + $0x20] sm:$0xff]
    %v156 = vld [vmem:[#allocation6 + $0x28] sm:$0xff]
    %v157 = vld [vmem:[#allocation6 + $0x30] sm:$0xff]
    %v158 = vld [vmem:[#allocation6 + $0x38] sm:$0xff]
    %v159 = vld [vmem:[#allocation6 + $0x40] sm:$0xff]
    %v160 = vld [vmem:[#allocation6 + $0x48] sm:$0xff]
    %v161 = vld [vmem:[#allocation6 + $0x50] sm:$0xff]
    %v162 = vld [vmem:[#allocation6 + $0x58] sm:$0xff]
    %v163 = vld [vmem:[#allocation6 + $0x60] sm:$0xff]
    %v164 = vld [vmem:[#allocation6 + $0x68] sm:$0xff]
    %v165 = vld [vmem:[#allocation6 + $0x70] sm:$0xff]
    %v166 = vld [vmem:[#allocation6 + $0x78] sm:$0xff]
    %167 = vmatprep.subr.mxu0 0.0
    %168 = vmatpush1.msra.mxu0 %v166
    %169 = vmatprep.subr.mxu0 0.0
    %170 = vmatpush1.msra.mxu0 %v165
    %171 = vmatprep.subr.mxu0 0.0
    %172 = vmatpush1.msra.mxu0 %v164
    %173 = vmatprep.subr.mxu0 0.0
    %174 = vmatpush1.msra.mxu0 %v163
    %175 = vmatprep.subr.mxu0 0.0
    %176 = vmatpush1.msra.mxu0 %v162
    %177 = vmatprep.subr.mxu0 0.0
    %178 = vmatpush1.msra.mxu0 %v161
    %179 = vmatprep.subr.mxu0 0.0
    %180 = vmatpush1.msra.mxu0 %v160
    %181 = vmatprep.subr.mxu0 0.0
    %182 = vmatpush1.msra.mxu0 %v159
    %183 = vmatprep.subr.mxu0 0.0
    %184 = vmatpush1.msra.mxu0 %v158
    %185 = vmatprep.subr.mxu0 0.0
    %186 = vmatpush1.msra.mxu0 %v157
    %187 = vmatprep.subr.mxu0 0.0
    %188 = vmatpush1.msra.mxu0 %v156
    %189 = vmatprep.subr.mxu0 0.0
    %190 = vmatpush1.msra.mxu0 %v155
    %191 = vmatprep.subr.mxu0 0.0
    %192 = vmatpush1.msra.mxu0 %v154
    %193 = vmatprep.subr.mxu0 0.0
    %194 = vmatpush1.msra.mxu0 %v153
    %195 = vmatprep.subr.mxu0 0.0
    %196 = vmatpush1.msra.mxu0 %v152
    %197 = vmatprep.subr.mxu0 0.0
    %198 = vmatpush1.msra.mxu0 %v151
    %199 = vmatprep.subr.mxu0 0.0
    %200 = vmatpush2.msra.mxu0 0.0
    %201 = vmatprep.subr.mxu0 0.0
    %202 = vmatpush2.msra.mxu0 0.0
    %203 = vmatprep.subr.mxu0 0.0
    %204 = vmatpush2.msra.mxu0 0.0
    %205 = vmatprep.subr.mxu0 0.0
    %206 = vmatpush2.msra.mxu0 0.0
    %207 = vmatprep.subr.mxu0 0.0
    %208 = vmatpush2.msra.mxu0 0.0
    %209 = vmatprep.subr.mxu0 0.0
    %210 = vmatpush2.msra.mxu0 0.0
    %211 = vmatprep.subr.mxu0 0.0
    %212 = vmatpush2.msra.mxu0 0.0
    %213 = vmatprep.subr.mxu0 0.0
    %214 = vmatpush2.msra.mxu0 0.0
    %215 = vmatprep.subr.mxu0 0.0
    %216 = vmatpush2.msra.mxu0 0.0
    %217 = vmatprep.subr.mxu0 0.0
    %218 = vmatpush2.msra.mxu0 0.0
    %219 = vmatprep.subr.mxu0 0.0
    %220 = vmatpush2.msra.mxu0 0.0
    %221 = vmatprep.subr.mxu0 0.0
    %222 = vmatpush2.msra.mxu0 0.0
    %223 = vmatprep.subr.mxu0 0.0
    %224 = vmatpush2.msra.mxu0 0.0
    %225 = vmatprep.subr.mxu0 0.0
    %226 = vmatpush2.msra.mxu0 0.0
    %227 = vmatprep.subr.mxu0 0.0
    %228 = vmatpush2.msra.mxu0 0.0
    %229 = vmatprep.subr.mxu0 0.0
    %230 = vmatpush2.msra.mxu0 0.0
    %231 = vmatprep.mubr.f32.mxu0 0.0
    %232 = vmatmul.mubr.f32.gmra.mxu0 %v150
    %v233 = vpop.f32.mrf.mxu0
    %v234 = vadd.f32 0.0, %v233
    %v235 = vpop.f32.mrf.mxu0
    %236 = vdwg.mxu0
    %237 = vst [vmem:[%s4] sm:$0xff] %v234
    // Predicated region
    $region30: #{modulating_net_forward.1} parent=1 // pred_check
      _
    $region31: #{modulating_net_forward.1} parent=1 // pred_check_branch
      %239 = sbr.rel (0) target = $region33
    $region32: #{modulating_net_forward.1} parent=1 // pred_region
      _
    $region33: #{modulating_net_forward.1} parent=1 // pred_fallthru
      _
    // Predicated region
    $region34: #{modulating_net_forward.1} parent=1 // pred_check
      _
    $region35: #{modulating_net_forward.1} parent=1 // pred_check_branch
      %241 = sbr.rel (0) target = $region37
    $region36: #{modulating_net_forward.1} parent=1 // pred_region
      _
    $region37: #{modulating_net_forward.1} parent=1 // pred_fallthru
      _
    %242 = vsyncpa [#allocation3], 1
    %243 = vsyncpa [#allocation5], 1

</llo_original>
